<compile_context>
chip_gen: v6e
topology: v6e:2x2x1
jax: 0.10.0
libtpu: 0.0.40
codegen_flags: <defaults>
</compile_context>

<pallas_src>
import jax
import jax.numpy as jnp
import numpy as np
from jax.experimental import pallas as pl
from jax.experimental.pallas import tpu as pltpu

_SQRT_2_OVER_PI = 0.7978845608028654  # sqrt(2/pi), plain Python float (weak type)


def _gelu_kernel(x_ref, o_ref):
    # f32 compute, cast on store.
    x = x_ref[...].astype(jnp.float32)
    inner = _SQRT_2_OVER_PI * (x + 0.044715 * (x * x * x))
    y = 0.5 * x * (1.0 + jnp.tanh(inner))  # tanh -> EUP slot, free vs. HBM stream
    o_ref[...] = y.astype(o_ref.dtype)


def _choose_layout(shape, dtype, target_block_bytes):
    """Pick a 2-D (rows, lanes) view and (tr, tc) block sizes for streaming."""
    dtype_bytes = np.dtype(dtype).itemsize
    total = int(np.prod(shape)) if len(shape) else 1
    hidden = int(shape[-1]) if len(shape) else 1

    # Lane dim: keep the original hidden if it is lane-dense; otherwise try to
    # refold the flat element stream onto a multiple-of-128 lane width.
    if hidden % 128 == 0 and hidden > 0:
        lanes = hidden
    else:
        lanes = hidden
        for cand in (512, 256, 128):
            if total % cand == 0:
                lanes = cand
                break
    rows = total // lanes  # exact by construction

    sub = {1: 32, 2: 16}.get(dtype_bytes, 8)  # sublane multiple per dtype packing

    # Column tile: full lane extent unless even `sub` rows of it blow the budget,
    # in which case tile lanes in multiples of 128.
    if lanes * sub * dtype_bytes <= target_block_bytes:
        tc = lanes
    else:
        tc = max(128, (target_block_bytes // (sub * dtype_bytes)) // 128 * 128)
        tc = min(tc, lanes)

    # Row tile: fill the byte budget, rounded down to the sublane multiple.
    tr = max(sub, (target_block_bytes // (tc * dtype_bytes)) // sub * sub)
    tr = min(tr, rows)  # taking the full row extent is always a legal block

    return rows, lanes, tr, tc


def gelu_pallas(x, *, target_block_bytes=2 * 1024 * 1024):
    """Elementwise tanh-GELU. Accepts any shape/dtype; matches PyTorch GELU."""
    orig_shape = x.shape
    if x.ndim == 0:
        x = x[None]

    rows, lanes, tr, tc = _choose_layout(x.shape, x.dtype, target_block_bytes)
    x2 = x.reshape(rows, lanes)

    total = rows * lanes
    dtype_bytes = np.dtype(x.dtype).itemsize
    grid = (pl.cdiv(rows, tr), pl.cdiv(lanes, tc))

    out = pl.pallas_call(
        _gelu_kernel,
        out_shape=jax.ShapeDtypeStruct((rows, lanes), x.dtype),
        grid_spec=pltpu.PrefetchScalarGridSpec(
            num_scalar_prefetch=0,
            grid=grid,
            in_specs=[pl.BlockSpec((tr, tc), lambda i, j: (i, j))],
            out_specs=pl.BlockSpec((tr, tc), lambda i, j: (i, j)),
        ),
        compiler_params=pltpu.CompilerParams(
            dimension_semantics=("parallel", "parallel"),
            vmem_limit_bytes=32 * 1024 * 1024,
        ),
        cost_estimate=pl.CostEstimate(
            flops=8 * total,
            transcendentals=total,
            bytes_accessed=2 * total * dtype_bytes,
        ),
    )(x2)

    return out.reshape(orig_shape)


def gelu_ref(x):
    return 0.5 * x * (1.0 + jnp.tanh(_SQRT_2_OVER_PI * (x + 0.044715 * jnp.power(x, 3))))


if __name__ == "__main__":
    key = jax.random.PRNGKey(0)

    # Main check: batch=2, seq=8, hidden=128, f32 (lane-dense fast path).
    x = jax.random.normal(key, (2, 8, 128), dtype=jnp.float32)
    y = gelu_pallas(x)
    jax.block_until_ready(y)
    y_ref = gelu_ref(x)
    assert y.shape == x.shape and y.dtype == x.dtype
    np.testing.assert_allclose(np.asarray(y), np.asarray(y_ref), atol=1e-5, rtol=1e-5)

    # bf16 path: f32 compute, cast on store.
    xb = jax.random.normal(jax.random.PRNGKey(1), (2, 8, 128), dtype=jnp.bfloat16)
    yb = gelu_pallas(xb)
    jax.block_until_ready(yb)
    assert yb.dtype == xb.dtype
    np.testing.assert_allclose(
        np.asarray(yb, dtype=np.float32),
        np.asarray(gelu_ref(xb.astype(jnp.float32))),
        atol=2e-2, rtol=2e-2,
    )

    # Non-multiple-of-128 hidden: exercises the lane-dense refold guard.
    xo = jax.random.normal(jax.random.PRNGKey(2), (4, 96), dtype=jnp.float32)
    yo = gelu_pallas(xo)
    jax.block_until_ready(yo)
    np.testing.assert_allclose(np.asarray(yo), np.asarray(gelu_ref(xo)), atol=1e-5, rtol=1e-5)

    print("KERNEL_OK")
</pallas_src>

<mosaic_0001>
module attributes {stable_mosaic.version = 11 : i64} {
  func.func @_gelu_kernel(%arg0: i32, %arg1: i32, %arg2: memref<16x128xf32, #tpu.memory_space<vmem>>, %arg3: memref<16x128xf32, #tpu.memory_space<vmem>>) attributes {dimension_semantics = [#tpu.dimension_semantics<parallel>, #tpu.dimension_semantics<parallel>], iteration_bounds = array<i64: 1, 1>, scalar_prefetch = 0 : i64, scratch_operands = 0 : i64, tpu.core_type = #tpu.core_type<tc>, window_params = [{transform_indices = @transform_0, window_bounds = array<i64: 16, 128>}, {transform_indices = @transform_1, window_bounds = array<i64: 16, 128>}]} {
    %c0 = arith.constant 0 : index
    %c0_0 = arith.constant 0 : index
    %0 = vector.load %arg2[%c0, %c0_0] : memref<16x128xf32, #tpu.memory_space<vmem>>, vector<16x128xf32>
    %1 = arith.mulf %0, %0 : vector<16x128xf32>
    %2 = arith.mulf %1, %0 : vector<16x128xf32>
    %cst = arith.constant 4.471500e-02 : f32
    %3 = vector.broadcast %cst : f32 to vector<16x128xf32>
    %4 = arith.mulf %3, %2 : vector<16x128xf32>
    %5 = arith.addf %0, %4 : vector<16x128xf32>
    %cst_1 = arith.constant 0.797884583 : f32
    %6 = vector.broadcast %cst_1 : f32 to vector<16x128xf32>
    %7 = arith.mulf %6, %5 : vector<16x128xf32>
    %cst_2 = arith.constant 5.000000e-01 : f32
    %8 = vector.broadcast %cst_2 : f32 to vector<16x128xf32>
    %9 = arith.mulf %8, %0 : vector<16x128xf32>
    %10 = math.tanh %7 : vector<16x128xf32>
    %cst_3 = arith.constant 1.000000e+00 : f32
    %11 = vector.broadcast %cst_3 : f32 to vector<16x128xf32>
    %12 = arith.addf %11, %10 : vector<16x128xf32>
    %13 = arith.mulf %9, %12 : vector<16x128xf32>
    %c0_4 = arith.constant 0 : index
    %c0_5 = arith.constant 0 : index
    %14 = vector.load %arg3[%c0_4, %c0_5] : memref<16x128xf32, #tpu.memory_space<vmem>>, vector<16x128xf32>
    tpu.vector_store %arg3[%c0_4, %c0_5], %13 {strides = array<i32>} : memref<16x128xf32, #tpu.memory_space<vmem>>, vector<16x128xf32>,
    return
  }
  func.func @transform_0(%arg0: i32, %arg1: i32) -> (i32, i32) {
    %c0_i32 = arith.constant 0 : i32
    return %arg0, %arg1 : i32, i32
  }
  func.func @transform_1(%arg0: i32, %arg1: i32) -> (i32, i32) {
    %c0_i32 = arith.constant 0 : i32
    return %arg0, %arg1 : i32, i32
  }
}

</mosaic_0001>

<llo_original>
// kernel: tpu_custom_call.1
$region0: #{tpu_custom_call.1}
  #allocation0 [shape = 'u32[]', space=smem, size = 0x4, offset = 0x4, fixed_abs, tag = 'smem constant byte address 0x4 - core index']
  #allocation1 [shape = 'u32[144,128]{1,0:T(1,128)}', space=vmem, size = 0x12000, scoped, tag = 'internal scratch']
  %s0 = inlined_call_operand.hbm [shape: f32[16,128], index: 0, kind: input, shape index: {}]
  %s1 = inlined_call_operand.hbm [shape: f32[16,128], index: 1, kind: output, shape index: {}]
  %s2 = sld [smem:[#allocation0]]
  $region18: #{tpu_custom_call.1} parent=0
    _
  %s4 = ssub.s32 1, %s2
  %s5 = scalar_select 0, %s4, %s2
  $region1: #{tpu_custom_call.1} parent=0
    #allocation2 [shape = 'u8[8192]{0}', space=vmem, size = 0x2000, scoped, tag = 'input window, operand 0, single buffered']
    #allocation3 [shape = 's32[1]{0}', space=sflag, size = 0x4, scoped, tag = 'scoped memory for tpu_custom_call.1']
    #allocation4 [shape = 's32[1]{0}', space=sflag, size = 0x4, scoped, tag = 'scoped memory for tpu_custom_call.1']
    #allocation5 [shape = 'u8[8192]{0}', space=vmem, size = 0x2000, scoped, tag = 'output window, operand 0, single buffered']
    %6 = vsyncpa [#allocation3], 0
    %7 = vsyncpa [#allocation4], 0
    // Predicated region
    $region2: #{tpu_custom_call.1} parent=1 // pred_check
      _
    $region3: #{tpu_custom_call.1} parent=1 // pred_check_branch
      %9 = sbr.rel (0) target = $region5
    $region4: #{tpu_custom_call.1} parent=1 // pred_region
      %s11 = ssub.s32 256, 256
      %12 = vsyncadd [#allocation3], %s11
      %s13 = sshll.u32 [#allocation2], 4
      %s14 = int_to_ptr.vmem [resolvable:$true] %s13
      %19 = dma.hbm_to_vmem [thread:$0]  %s0, 256, %s14, [#allocation3], 128, 128, 8
    $region5: #{tpu_custom_call.1} parent=1 // pred_fallthru
      _
    // Predicated region
    $region6: #{tpu_custom_call.1} parent=1 // pred_check
      _
    $region7: #{tpu_custom_call.1} parent=1 // pred_check_branch
      %21 = sbr.rel (0) target = $region9
    $region8: #{tpu_custom_call.1} parent=1 // pred_region
      %22 = dma.done [#allocation3], 256
    $region9: #{tpu_custom_call.1} parent=1 // pred_fallthru
      _
    %v23 = vld [vmem:[#allocation2] sm:$0xff]
    %v24 = vld [vmem:[#allocation2 + $0x8] sm:$0xff]
    %v25 = vmul.f32 %v23, %v23
    %v26 = vmul.f32 %v24, %v24
    %v27 = vmul.f32 %v25, %v23
    %v28 = vmul.f32 %v26, %v24
    %v29 = vmul.f32 %v27, 0.044715
    %v30 = vmul.f32 %v28, 0.044715
    %v31 = vadd.f32 %v23, %v29
    %v32 = vadd.f32 %v24, %v30
    %v33 = vmul.f32 %v31, 0.7978846
    %v34 = vmul.f32 %v32, 0.7978846
    %v35 = vmul.f32 %v23, 0.5
    %v36 = vmul.f32 %v24, 0.5
    %v37 = vtanh.pop %v33
    %v38 = vtanh.pop %v34
    %v39 = vadd.f32 %v37, 1.0
    %v40 = vadd.f32 %v38, 1.0
    %v41 = vmul.f32 %v35, %v39
    %v42 = vmul.f32 %v36, %v40
    %43 = vst [vmem:[#allocation5] sm:$0xff] %v41
    %44 = vst [vmem:[#allocation5 + $0x8] sm:$0xff] %v42
    // Predicated region
    $region10: #{tpu_custom_call.1} parent=1 // pred_check
      _
    $region11: #{tpu_custom_call.1} parent=1 // pred_check_branch
      %46 = sbr.rel (0) target = $region13
    $region12: #{tpu_custom_call.1} parent=1 // pred_region
      %s48 = ssub.s32 256, 256
      %49 = vsyncadd [#allocation4], %s48
      %s50 = sshll.u32 [#allocation5], 4
      %s51 = int_to_ptr.vmem [resolvable:$true] %s50
      %56 = dma.vmem_to_hbm [thread:$0]  %s51, 256, %s1, [#allocation4], 128, 128, 8
    $region13: #{tpu_custom_call.1} parent=1 // pred_fallthru
      _
    // Predicated region
    $region14: #{tpu_custom_call.1} parent=1 // pred_check
      _
    $region15: #{tpu_custom_call.1} parent=1 // pred_check_branch
      %58 = sbr.rel (0) target = $region17
    $region16: #{tpu_custom_call.1} parent=1 // pred_region
      %59 = dma.done [#allocation4], 256
    $region17: #{tpu_custom_call.1} parent=1 // pred_fallthru
      _
    %60 = vsyncpa [#allocation3], 1
    %61 = vsyncpa [#allocation4], 1

</llo_original>
